<compile_context>
chip_gen: v7x
topology: tpu7x:2x2x1
jax: 0.10.0
libtpu: 0.0.40
codegen_flags: <defaults>
</compile_context>

<pallas_src>
import functools

import jax
import jax.numpy as jnp
from jax.experimental import pallas as pl
from jax.experimental.pallas import tpu as pltpu


def _round_up(x, m):
    return (x + m - 1) // m * m


def _pick_vmem_limit():
    # v5e/v6e: 128 MiB physical VMEM -> allow deep buffering; v7x: 64 MiB.
    try:
        cap = int(pltpu.get_tpu_info().vmem_capacity_bytes)
    except Exception:
        cap = 64 * 1024 * 1024
    return max(32 * 1024 * 1024, min(100 * 1024 * 1024, (cap * 3) // 4))


_VMEM_LIMIT_BYTES = _pick_vmem_limit()


def _block_kernel(x_ref, w_ref, m_ref, o_ref, *scratch,
                  ngj, ng, gk, we, oh, ow, pe, use_slab):
    # x_ref: (1, s*s*ICp, HWE) bf16  -- space-to-depth planes merged into channels
    # w_ref: (OCT, ng*gk) bf16 [slab path]  or  (ng, OCT, gk) bf16 [group path]
    # m_ref: (1, PE) f32 {0,1}  -- valid-lane mask (precomputed in the wrapper)
    # o_ref: (1, OCT, PE) bf16
    oct_ = o_ref.shape[1]

    if use_slab:
        slab_ref = scratch[0]
        # Stack the ng shifted views so the conv becomes ONE MXU matmul with
        # K = kh*kw*ICp (>=128 even for tiny IC): no per-tap accumulator
        # round-trips, full MXU contraction depth.
        for g in range(ng):
            gi, gj = divmod(g, ngj)
            off = gi * we + gj
            slab_ref[g * gk:(g + 1) * gk, :] = x_ref[0, :, off:off + pe]
        y = jnp.dot(w_ref[...], slab_ref[...],
                    preferred_element_type=jnp.float32)          # (OCT, PE) f32
    else:
        # Large-IC path: K = s*s*ICp >= 128 per group already; ng dots.
        # TODO(synk): on v7x verify Mosaic keeps these partials in the MRB
        # (in-place matmul accumulate) instead of round-tripping `acc`.
        acc = jnp.zeros((oct_, pe), jnp.float32)
        for g in range(ng):
            gi, gj = divmod(g, ngj)
            off = gi * we + gj
            acc = acc + jnp.dot(w_ref[g], x_ref[0, :, off:off + pe],
                                preferred_element_type=jnp.float32)
        y = acc

    # InstanceNorm2d (no affine, biased var, eps=1e-5) over the OH*OW valid
    # lanes.  The conv bias is dropped entirely: mean subtraction cancels it
    # exactly, which also keeps the single-pass var = E[y^2] - mean^2 well
    # conditioned (conv outputs are ~zero-mean without a bias).
    mask = m_ref[...]                                            # (1, PE)
    ym = y * mask
    inv_n = 1.0 / float(oh * ow)
    mean = jnp.sum(ym, axis=1, keepdims=True) * inv_n
    ex2 = jnp.sum(ym * ym, axis=1, keepdims=True) * inv_n
    var = ex2 - mean * mean
    yn = (y - mean) * jax.lax.rsqrt(var + 1e-5)                  # rsqrt -> EUP

    # LeakyReLU(0.2); emit bf16 to halve HBM writeback.
    o_ref[0] = jnp.where(yn > 0.0, yn, 0.2 * yn).astype(o_ref.dtype)


@functools.partial(jax.jit, static_argnames=("stride",))
def block_forward(x, weight, bias, stride):
    """x: (N, IC, H, W) NCHW; weight: (OC, IC, 4, 4); bias: (OC,) -- accepted
    for API parity but unused: InstanceNorm2d(affine=False) cancels a
    per-channel conv bias exactly.  Returns bf16 NCHW activations."""
    del bias
    n, ic, h, w = x.shape
    oc, _, kh, kw = weight.shape
    s = int(stride)

    # ---- geometry ----------------------------------------------------------
    xp = jnp.pad(x, ((0, 0), (0, 0), (1, 1), (1, 1)), mode="reflect")
    hp, wp = h + 2, w + 2
    oh = (hp - kh) // s + 1
    ow = (wp - kw) // s + 1

    we = ow + (kw - 1) // s                 # plane width (few garbage cols)
    pe = _round_up(oh * we, 128)            # lane-padded spatial extent
    ngi = -(-kh // s)                       # tap-offset groups per axis
    ngj = -(-kw // s)
    ng = ngi * ngj
    off_max = (ngi - 1) * we + (ngj - 1)
    he = -(-(off_max + pe) // we)           # plane rows so every slice is in bounds
    hwe = _round_up(he * we, 128)           # 128-aligned lanes -> tile-aligned DMA

    icp = _round_up(ic, 8)
    gk = s * s * icp                        # per-offset-group contraction depth
    # Full tap fusion via a VMEM slab only when K is otherwise shallow and the
    # slab stays small.
    use_slab = (gk < 128) and (ng * gk * pe * 2 <= 12 * 1024 * 1024)

    ocp = _round_up(oc, 16)                 # no padding to 128: no garbage OC rows
    oct_ = 128 if ocp % 128 == 0 else ocp   # 128 (never 256): v5e MXU / v7x 2-TC

    # ---- space-to-depth planes: (N, s*s*ICp, HWE), lane-dense spatial -------
    xp = xp[:, :, :he * s, :we * s]
    xp = jnp.pad(xp, ((0, 0), (0, icp - ic),
                      (0, he * s - xp.shape[2]), (0, we * s - xp.shape[3])))
    planes = xp.reshape(n, icp, he, s, we, s)
    planes = jnp.transpose(planes, (0, 3, 5, 1, 2, 4))   # (N, pi, pj, ICp, HE, WE)
    planes = planes.reshape(n, s * s * icp, he * we)
    planes = jnp.pad(planes, ((0, 0), (0, 0), (0, hwe - he * we)))
    planes = planes.astype(jnp.bfloat16)

    # ---- weights: tap-offset grouped, K on the lane axis (lane-dense) -------
    khp, kwp = ngi * s, ngj * s
    wpad = jnp.pad(weight, ((0, ocp - oc), (0, icp - ic),
                            (0, khp - kh), (0, kwp - kw)))  # (OCp, ICp, KHp, KWp)
    wr = wpad.reshape(ocp, icp, ngi, s, ngj, s)             # (oc, ic, gi, pi, gj, pj)
    wr = jnp.transpose(wr, (0, 2, 4, 3, 5, 1))              # (oc, gi, gj, pi, pj, ic)
    if use_slab:
        wt = wr.reshape(ocp, ng * gk).astype(jnp.bfloat16)          # (OCp, NG*GK)
        w_spec = pl.BlockSpec((oct_, ng * gk), lambda b, j: (j, 0))
    else:
        wt = jnp.transpose(wr.reshape(ocp, ng, gk), (1, 0, 2))      # (NG, OCp, GK)
        wt = wt.astype(jnp.bfloat16)
        w_spec = pl.BlockSpec((ng, oct_, gk), lambda b, j: (0, j, 0))

    # ---- valid-lane mask precomputed once (no per-step VPU div/mod) ---------
    lane = jnp.arange(pe, dtype=jnp.int32)
    mask = (((lane % we) < ow) & ((lane // we) < oh)).astype(jnp.float32)
    mask = mask.reshape(1, pe)

    kern = functools.partial(_block_kernel, ngj=ngj, ng=ng, gk=gk,
                             we=we, oh=oh, ow=ow, pe=pe, use_slab=use_slab)
    scratch = [pltpu.VMEM((ng * gk, pe), jnp.bfloat16)] if use_slab else []

    out = pl.pallas_call(
        kern,
        out_shape=jax.ShapeDtypeStruct((n, ocp, pe), jnp.bfloat16),
        grid_spec=pltpu.PrefetchScalarGridSpec(
            num_scalar_prefetch=0,
            grid=(n, ocp // oct_),
            in_specs=[
                # Input block index independent of j -> slab stays resident
                # across OC tiles (no re-DMA).
                pl.BlockSpec((1, s * s * icp, hwe), lambda b, j: (b, 0, 0)),
                w_spec,
                pl.BlockSpec((1, pe), lambda b, j: (0, 0)),
            ],
            out_specs=pl.BlockSpec((1, oct_, pe), lambda b, j: (b, j, 0)),
            scratch_shapes=scratch,
        ),
        compiler_params=pltpu.CompilerParams(
            dimension_semantics=("parallel", "parallel"),
            vmem_limit_bytes=_VMEM_LIMIT_BYTES,
        ),
    )(planes, wt, mask)

    # (N, OCp, PE) -> NCHW (N, OC, OH, OW): slice off padding, reshape only.
    out = out[:, :oc, :oh * we].reshape(n, oc, oh, we)[:, :, :, :ow]
    return out


def _reference(x, weight, bias, stride):
    """Pure-JAX f32 reference mirroring the PyTorch module (bias included)."""
    xp = jnp.pad(x, ((0, 0), (0, 0), (1, 1), (1, 1)), mode="reflect")
    y = jax.lax.conv_general_dilated(
        xp, weight, window_strides=(stride, stride), padding="VALID",
        dimension_numbers=("NCHW", "OIHW", "NCHW"))
    y = y + bias.reshape(1, -1, 1, 1)
    mean = jnp.mean(y, axis=(2, 3), keepdims=True)
    var = jnp.mean((y - mean) ** 2, axis=(2, 3), keepdims=True)
    yn = (y - mean) / jnp.sqrt(var + 1e-5)
    return jnp.where(yn > 0, yn, 0.2 * yn)


def _check(x, weight, bias, stride):
    out = jax.block_until_ready(block_forward(x, weight, bias, stride))
    ref = _reference(x, weight, bias, stride)
    assert out.shape == ref.shape, (out.shape, ref.shape)
    out_f32 = out.astype(jnp.float32)
    err = float(jnp.max(jnp.abs(out_f32 - ref)))
    # bf16 MXU inputs + bf16 output vs f32 reference -> loosened tolerance.
    assert jnp.allclose(out_f32, ref, atol=5e-2, rtol=5e-2), err


if __name__ == "__main__":
    key = jax.random.PRNGKey(0)
    k_x, k_w, k_b, k_x2, k_w2, k_b2 = jax.random.split(key, 6)

    # Case 1: small IC -> slab-fused path (single K=128 matmul per step).
    N, IC, H, W, OC, STRIDE = 2, 4, 16, 16, 8, 2
    x = jax.random.normal(k_x, (N, IC, H, W), dtype=jnp.float32)
    weight = jax.random.normal(k_w, (OC, IC, 4, 4), dtype=jnp.float32) * 0.1
    bias = jax.random.normal(k_b, (OC,), dtype=jnp.float32) * 0.1
    _check(x, weight, bias, STRIDE)

    # Case 2: larger IC -> grouped-dot path (K = s*s*ICp = 128 per group).
    N2, IC2, H2, W2, OC2, STRIDE2 = 1, 32, 8, 8, 16, 2
    x2 = jax.random.normal(k_x2, (N2, IC2, H2, W2), dtype=jnp.float32)
    weight2 = jax.random.normal(k_w2, (OC2, IC2, 4, 4), dtype=jnp.float32) * 0.05
    bias2 = jax.random.normal(k_b2, (OC2,), dtype=jnp.float32) * 0.1
    _check(x2, weight2, bias2, STRIDE2)

    print("KERNEL_OK")
</pallas_src>

<mosaic_0001>
module attributes {stable_mosaic.version = 11 : i64} {
  func.func @_block_kernel(%arg0: i32, %arg1: i32, %arg2: memref<1x32x256xbf16, #tpu.memory_space<vmem>>, %arg3: memref<16x128xbf16, #tpu.memory_space<vmem>>, %arg4: memref<1x128xf32, #tpu.memory_space<vmem>>, %arg5: memref<1x16x128xbf16, #tpu.memory_space<vmem>>, %arg6: memref<128x128xbf16, #tpu.memory_space<vmem>>) attributes {dimension_semantics = [#tpu.dimension_semantics<parallel>, #tpu.dimension_semantics<parallel>], iteration_bounds = array<i64: 2, 1>, scalar_prefetch = 0 : i64, scratch_operands = 1 : i64, tpu.core_type = #tpu.core_type<tc>, window_params = [{transform_indices = @transform_0, window_bounds = array<i64: 1, 32, 256>}, {transform_indices = @transform_1, window_bounds = array<i64: 16, 128>}, {pipeline_mode = #tpu.pipeline_mode<synchronous>, transform_indices = @transform_2, window_bounds = array<i64: 1, 128>}, {transform_indices = @transform_3, window_bounds = array<i64: 1, 16, 128>}]} {
    %c0 = arith.constant 0 : index
    %c0_0 = arith.constant 0 : index
    %c0_1 = arith.constant 0 : index
    %0 = vector.load %arg2[%c0, %c0_0, %c0_1] : memref<1x32x256xbf16, #tpu.memory_space<vmem>>, vector<1x32x128xbf16>
    %1 = vector.shape_cast %0 : vector<1x32x128xbf16> to vector<32x128xbf16>
    %c0_2 = arith.constant 0 : index
    %c0_3 = arith.constant 0 : index
    %2 = vector.load %arg6[%c0_2, %c0_3] : memref<128x128xbf16, #tpu.memory_space<vmem>>, vector<32x128xbf16>
    tpu.vector_store %arg6[%c0_2, %c0_3], %1 {strides = array<i32>} : memref<128x128xbf16, #tpu.memory_space<vmem>>, vector<32x128xbf16>,
    %c0_4 = arith.constant 0 : index
    %c0_5 = arith.constant 0 : index
    %c1 = arith.constant 1 : index
    %3 = vector.load %arg2[%c0_4, %c0_5, %c1] : memref<1x32x256xbf16, #tpu.memory_space<vmem>>, vector<1x32x128xbf16>
    %4 = vector.shape_cast %3 : vector<1x32x128xbf16> to vector<32x128xbf16>
    %c32 = arith.constant 32 : index
    %c0_6 = arith.constant 0 : index
    %5 = vector.load %arg6[%c32, %c0_6] : memref<128x128xbf16, #tpu.memory_space<vmem>>, vector<32x128xbf16>
    tpu.vector_store %arg6[%c32, %c0_6], %4 {strides = array<i32>} : memref<128x128xbf16, #tpu.memory_space<vmem>>, vector<32x128xbf16>,
    %c0_7 = arith.constant 0 : index
    %c0_8 = arith.constant 0 : index
    %c9 = arith.constant 9 : index
    %6 = vector.load %arg2[%c0_7, %c0_8, %c9] : memref<1x32x256xbf16, #tpu.memory_space<vmem>>, vector<1x32x128xbf16>
    %7 = vector.shape_cast %6 : vector<1x32x128xbf16> to vector<32x128xbf16>
    %c64 = arith.constant 64 : index
    %c0_9 = arith.constant 0 : index
    %8 = vector.load %arg6[%c64, %c0_9] : memref<128x128xbf16, #tpu.memory_space<vmem>>, vector<32x128xbf16>
    tpu.vector_store %arg6[%c64, %c0_9], %7 {strides = array<i32>} : memref<128x128xbf16, #tpu.memory_space<vmem>>, vector<32x128xbf16>,
    %c0_10 = arith.constant 0 : index
    %c0_11 = arith.constant 0 : index
    %c10 = arith.constant 10 : index
    %9 = vector.load %arg2[%c0_10, %c0_11, %c10] : memref<1x32x256xbf16, #tpu.memory_space<vmem>>, vector<1x32x128xbf16>
    %10 = vector.shape_cast %9 : vector<1x32x128xbf16> to vector<32x128xbf16>
    %c96 = arith.constant 96 : index
    %c0_12 = arith.constant 0 : index
    %11 = vector.load %arg6[%c96, %c0_12] : memref<128x128xbf16, #tpu.memory_space<vmem>>, vector<32x128xbf16>
    tpu.vector_store %arg6[%c96, %c0_12], %10 {strides = array<i32>} : memref<128x128xbf16, #tpu.memory_space<vmem>>, vector<32x128xbf16>,
    %c0_13 = arith.constant 0 : index
    %c0_14 = arith.constant 0 : index
    %12 = vector.load %arg3[%c0_13, %c0_14] : memref<16x128xbf16, #tpu.memory_space<vmem>>, vector<16x128xbf16>
    %c0_15 = arith.constant 0 : index
    %c0_16 = arith.constant 0 : index
    %13 = vector.load %arg6[%c0_15, %c0_16] : memref<128x128xbf16, #tpu.memory_space<vmem>>, vector<128x128xbf16>
    %cst = arith.constant dense<0.000000e+00> : vector<16x128xf32>
    %14 = tpu.matmul %12, %13, %cst {dimension_numbers = #tpu.dot_dimension_numbers<[1], [0], [0], [1], [0, 0, 1, 1], [], []>} : vector<16x128xbf16>, vector<128x128xbf16>, vector<16x128xf32> -> vector<16x128xf32>
    %c0_17 = arith.constant 0 : index
    %c0_18 = arith.constant 0 : index
    %15 = vector.load %arg4[%c0_17, %c0_18] : memref<1x128xf32, #tpu.memory_space<vmem>>, vector<1x128xf32>
    %16 = vector.broadcast %15 : vector<1x128xf32> to vector<16x128xf32>
    %17 = arith.mulf %14, %16 : vector<16x128xf32>
    %cst_19 = arith.constant dense<0.000000e+00> : vector<16xf32>
    %18 = vector.multi_reduction <add>, %17, %cst_19 [1] : vector<16x128xf32> to vector<16xf32>
    %19 = vector.shape_cast %18 : vector<16xf32> to vector<16x1xf32>
    %cst_20 = arith.constant 1.562500e-02 : f32
    %20 = vector.broadcast %cst_20 : f32 to vector<16x1xf32>
    %21 = arith.mulf %19, %20 : vector<16x1xf32>
    %22 = arith.mulf %17, %17 : vector<16x128xf32>
    %cst_21 = arith.constant dense<0.000000e+00> : vector<16xf32>
    %23 = vector.multi_reduction <add>, %22, %cst_21 [1] : vector<16x128xf32> to vector<16xf32>
    %24 = vector.shape_cast %23 : vector<16xf32> to vector<16x1xf32>
    %cst_22 = arith.constant 1.562500e-02 : f32
    %25 = vector.broadcast %cst_22 : f32 to vector<16x1xf32>
    %26 = arith.mulf %24, %25 : vector<16x1xf32>
    %27 = arith.mulf %21, %21 : vector<16x1xf32>
    %28 = arith.subf %26, %27 : vector<16x1xf32>
    %29 = vector.broadcast %21 : vector<16x1xf32> to vector<16x128xf32>
    %30 = arith.subf %14, %29 : vector<16x128xf32>
    %cst_23 = arith.constant 9.99999974E-6 : f32
    %31 = vector.broadcast %cst_23 : f32 to vector<16x1xf32>
    %32 = arith.addf %28, %31 : vector<16x1xf32>
    %33 = math.rsqrt %32 : vector<16x1xf32>
    %34 = vector.broadcast %33 : vector<16x1xf32> to vector<16x128xf32>
    %35 = arith.mulf %30, %34 : vector<16x128xf32>
    %cst_24 = arith.constant 0.000000e+00 : f32
    %36 = vector.broadcast %cst_24 : f32 to vector<16x128xf32>
    %37 = arith.cmpf ogt, %35, %36 : vector<16x128xf32>
    %cst_25 = arith.constant 2.000000e-01 : f32
    %38 = vector.broadcast %cst_25 : f32 to vector<16x128xf32>
    %39 = arith.mulf %38, %35 : vector<16x128xf32>
    %40 = arith.select %37, %35, %39 : vector<16x128xi1>, vector<16x128xf32>
    %41 = arith.truncf %40 : vector<16x128xf32> to vector<16x128xbf16>
    %c0_26 = arith.constant 0 : index
    %c0_27 = arith.constant 0 : index
    %c0_28 = arith.constant 0 : index
    %42 = vector.load %arg5[%c0_26, %c0_27, %c0_28] : memref<1x16x128xbf16, #tpu.memory_space<vmem>>, vector<1x16x128xbf16>
    %43 = vector.shape_cast %42 : vector<1x16x128xbf16> to vector<16x128xbf16>
    %44 = vector.shape_cast %41 : vector<16x128xbf16> to vector<1x16x128xbf16>
    tpu.vector_store %arg5[%c0_26, %c0_27, %c0_28], %44 {strides = array<i32>} : memref<1x16x128xbf16, #tpu.memory_space<vmem>>, vector<1x16x128xbf16>,
    return
  }
  func.func @transform_0(%arg0: i32, %arg1: i32) -> (i32, i32, i32) {
    %c0_i32 = arith.constant 0 : i32
    %c0_i32_0 = arith.constant 0 : i32
    %c0_i32_1 = arith.constant 0 : i32
    return %arg0, %c0_i32, %c0_i32_0 : i32, i32, i32
  }
  func.func @transform_1(%arg0: i32, %arg1: i32) -> (i32, i32) {
    %c0_i32 = arith.constant 0 : i32
    %c0_i32_0 = arith.constant 0 : i32
    return %arg1, %c0_i32 : i32, i32
  }
  func.func @transform_2(%arg0: i32, %arg1: i32) -> (i32, i32) {
    %c0_i32 = arith.constant 0 : i32
    %c0_i32_0 = arith.constant 0 : i32
    %c0_i32_1 = arith.constant 0 : i32
    return %c0_i32, %c0_i32_0 : i32, i32
  }
  func.func @transform_3(%arg0: i32, %arg1: i32) -> (i32, i32, i32) {
    %c0_i32 = arith.constant 0 : i32
    %c0_i32_0 = arith.constant 0 : i32
    return %arg0, %arg1, %c0_i32 : i32, i32, i32
  }
}

</mosaic_0001>

<llo_original>
// kernel: block_forward.1
$region0: #{block_forward.1}
  #allocation0 [shape = 'u32[]', space=smem, size = 0x4, offset = 0x4, fixed_abs, tag = 'smem constant byte address 0x4 - core index']
  #allocation1 [shape = 'u32[144,128]{1,0:T(1,128)}', space=vmem, size = 0x12000, scoped, tag = 'internal scratch']
  #allocation2 [shape = 'bf16[128,128]{1,0:T(16,128)(2,1)}', space=vmem, size = 0x8000, scoped, tag = 'scratch operand']
  %s0 = inlined_call_operand.vmem [shape: bf16[2,32,256], index: 0, kind: input, shape index: {}]
  %s1 = inlined_call_operand.vmem [shape: bf16[16,128], index: 1, kind: input, shape index: {}]
  %s2 = inlined_call_operand.vmem [shape: f32[1,128], index: 2, kind: input, shape index: {}]
  %s3 = inlined_call_operand.vmem [shape: bf16[2,16,128], index: 3, kind: output, shape index: {}]
  %s4 = sld [smem:[#allocation0]]
  $region45: #{block_forward.1} parent=0
    _
  %s6 = ssub.s32 1, %s4
  %s7 = scalar_select 0, %s6, %s4
  loop: start=0, step=1, limit=4
  $region2: #{block_forward.1} parent=0 // loop_pre_header
    _
  $region3: #{block_forward.1} parent=0 // loop_header
    %s9 = sphi 0, %s13
    %p10 = scmp.ge.s32.totalorder %s9, 4
    %s16 = sphi 0, %s28
    %s17 = sphi 0, %s24
    %s18 = sphi 0, %s16
    %s19 = sphi 0, %s17
    %s20 = sphi 0, %s18
    %s21 = sphi 0, %s19
    %s31 = sphi 0, %s33
    %s34 = sphi 0, %s31
    %s35 = sphi 0, %s34
    %s51 = sphi 0, %s35
    %s57 = sphi 0, %s59
    %s60 = sphi 0, %s57
    %s61 = sphi 0, %s60
    %s77 = sphi 0, %s61
    %s81 = sphi 0, %s81
    %s83 = sphi 0, %s81
    %s84 = sphi 0, %s83
    %s98 = sphi 0, %s84
    %s106 = sphi 0, %s108
    %s109 = sphi 0, %s106
    %s110 = sphi 0, %s109
    %s126 = sphi 0, %s110
  $region4: #{block_forward.1} parent=0 // loop_header_branch
    %12 = sbr.rel (%p10) target = $region8
  $region5: #{block_forward.1} parent=0 // loop_body
    %s14 = ssub.s32 %s9, 1
    %s15 = ssub.s32 %s9, 2
    %s22 = sadd.s32 1, %s17
    %p23 = scmp.ge.s32.totalorder %s22, 1
    %s24 = scalar_select %p23, 0, %s22
    %s25 = sadd.s32 1, %s16
    %s26 = scalar_select %p23, %s25, %s16
    %p27 = scmp.ge.s32.totalorder %s26, 2
    %s28 = scalar_select %p27, 0, %s26
    %s29 = ssub.s32 %s16, %s28
    %p30 = scmp.eq.s32.totalorder %s29, 0
    %s32 = sadd.s32 %s31, 1
    %s33 = scalar_select %p30, %s31, %s32
    %p36 = pneg %p30
    %p37 = scmp.eq.s32.totalorder %s9, 1
    %p38 = por %p36, %p37
    %p39 = scmp.ne.s32.totalorder %s31, %s34
    %p40 = scmp.eq.s32.totalorder %s9, 0
    %p41 = por %p39, %p40
    %p42 = scmp.ne.s32.totalorder %s31, %s34
    %p43 = scmp.eq.s32.totalorder %s14, 1
    %p44 = por %p42, %p43
    %p45 = scmp.ne.s32.totalorder %s34, %s35
    %p46 = scmp.eq.s32.totalorder %s14, 0
    %p47 = por %p45, %p46
    %p48 = scmp.ne.s32.totalorder %s34, %s35
    %p49 = scmp.eq.s32.totalorder %s15, 1
    %p50 = por %p48, %p49
    %p52 = scmp.ne.s32.totalorder %s35, %s51
    %p53 = scmp.eq.s32.totalorder %s15, 0
    %p54 = por %p52, %p53
    %s55 = ssub.s32 %s17, %s24
    %p56 = scmp.eq.s32.totalorder %s55, 0
    %s58 = sadd.s32 %s57, 1
    %s59 = scalar_select %p56, %s57, %s58
    %p62 = pneg %p56
    %p63 = scmp.eq.s32.totalorder %s9, 1
    %p64 = por %p62, %p63
    %p65 = scmp.ne.s32.totalorder %s57, %s60
    %p66 = scmp.eq.s32.totalorder %s9, 0
    %p67 = por %p65, %p66
    %p68 = scmp.ne.s32.totalorder %s57, %s60
    %p69 = scmp.eq.s32.totalorder %s14, 1
    %p70 = por %p68, %p69
    %p71 = scmp.ne.s32.totalorder %s60, %s61
    %p72 = scmp.eq.s32.totalorder %s14, 0
    %p73 = por %p71, %p72
    %p74 = scmp.ne.s32.totalorder %s60, %s61
    %p75 = scmp.eq.s32.totalorder %s15, 1
    %p76 = por %p74, %p75
    %p78 = scmp.ne.s32.totalorder %s61, %s77
    %p79 = scmp.eq.s32.totalorder %s15, 0
    %p80 = por %p78, %p79
    %s82 = sadd.s32 %s81, 1
    %p85 = scmp.eq.s32.totalorder %s9, 1
    %p86 = scmp.ne.s32.totalorder %s81, %s83
    %p87 = scmp.eq.s32.totalorder %s9, 0
    %p88 = por %p86, %p87
    %p89 = scmp.ne.s32.totalorder %s81, %s83
    %p90 = scmp.eq.s32.totalorder %s14, 1
    %p91 = por %p89, %p90
    %p92 = scmp.ne.s32.totalorder %s83, %s84
    %p93 = scmp.eq.s32.totalorder %s14, 0
    %p94 = por %p92, %p93
    %p95 = scmp.ne.s32.totalorder %s83, %s84
    %p96 = scmp.eq.s32.totalorder %s15, 1
    %p97 = por %p95, %p96
    %p99 = scmp.ne.s32.totalorder %s84, %s98
    %p100 = scmp.eq.s32.totalorder %s15, 0
    %p101 = por %p99, %p100
    %s102 = ssub.s32 %s16, %s28
    %s103 = ssub.s32 %s17, %s24
    %s104 = sor.u32 %s102, %s103
    %p105 = scmp.eq.s32.totalorder %s104, 0
    %s107 = sadd.s32 %s106, 1
    %s108 = scalar_select %p105, %s106, %s107
    %p111 = pneg %p105
    %p112 = scmp.eq.s32.totalorder %s9, 1
    %p113 = por %p111, %p112
    %p114 = scmp.ne.s32.totalorder %s106, %s109
    %p115 = scmp.eq.s32.totalorder %s9, 0
    %p116 = por %p114, %p115
    %p117 = scmp.ne.s32.totalorder %s106, %s109
    %p118 = scmp.eq.s32.totalorder %s14, 1
    %p119 = por %p117, %p118
    %p120 = scmp.ne.s32.totalorder %s109, %s110
    %p121 = scmp.eq.s32.totalorder %s14, 0
    %p122 = por %p120, %p121
    %p123 = scmp.ne.s32.totalorder %s109, %s110
    %p124 = scmp.eq.s32.totalorder %s15, 1
    %p125 = por %p123, %p124
    %p127 = scmp.ne.s32.totalorder %s110, %s126
    %p128 = scmp.eq.s32.totalorder %s15, 0
    %p129 = por %p127, %p128
    %p130 = scmp.le.s32.totalorder 1, %s9
    %p131 = scmp.lt.s32.totalorder %s9, 3
    %p132 = pnand %p130, %p131
    %p133 = pneg %p132
    // Predicated region
    $region9: #{block_forward.1} parent=5 // pred_check
      _
    $region10: #{block_forward.1} parent=5 // pred_check_branch
      %135 = sbr.rel (%p132) target = $region12
    $region11: #{block_forward.1} parent=5 // pred_region
      %s136 = ssub.s32 %s9, 1
      // Predicated region
      $region13: #{block_forward.1} parent=11 // pred_check
        %p137 = pneg %p73
      $region14: #{block_forward.1} parent=11 // pred_check_branch
        %139 = sbr.rel (%p137) target = $region16
      $region15: #{block_forward.1} parent=11 // pred_region
        %s140 = smul.u32 2, %s19
        %p141 = scmp.lt.s32.totalorder %s140, 1
        %s142 = scalar_select %p141, %s140, 1
        %s143 = smul.addr %s142, 4
        %s144 = scalar_lea.vmem %s1, %s143
        %s145 = smul.u32 2, %s19
      $region16: #{block_forward.1} parent=11 // pred_fallthru
        _
      // Predicated region
      $region17: #{block_forward.1} parent=11 // pred_check
        %p146 = pneg %p94
      $region18: #{block_forward.1} parent=11 // pred_check_branch
        %148 = sbr.rel (%p146) target = $region20
      $region19: #{block_forward.1} parent=11 // pred_region
        _
      $region20: #{block_forward.1} parent=11 // pred_fallthru
        _
    $region12: #{block_forward.1} parent=5 // pred_fallthru
      _
    %p149 = scmp.lt.s32.totalorder %s9, 2
    // Predicated region
    $region21: #{block_forward.1} parent=5 // pred_check
      %p150 = pneg %p149
    $region22: #{block_forward.1} parent=5 // pred_check_branch
      %152 = sbr.rel (%p150) target = $region24
    $region23: #{block_forward.1} parent=5 // pred_region
      // Predicated region
      $region25: #{block_forward.1} parent=23 // pred_check
        %p153 = pneg %p41
      $region26: #{block_forward.1} parent=23 // pred_check_branch
        %155 = sbr.rel (%p153) target = $region28
      $region27: #{block_forward.1} parent=23 // pred_region
        %p156 = scmp.lt.s32.totalorder %s16, 1
        %s157 = scalar_select %p156, %s16, 1
        %s158 = smul.addr %s157, 8
        %s159 = smul.addr %s158, 4
        %s160 = scalar_lea.vmem %s0, %s159
      $region28: #{block_forward.1} parent=23 // pred_fallthru
        _
    $region24: #{block_forward.1} parent=5 // pred_fallthru
      _
    %p161 = scmp.le.s32.totalorder 1, %s9
    %p162 = scmp.lt.s32.totalorder %s9, 3
    %p163 = pnand %p161, %p162
    %p164 = pneg %p163
    // Predicated region
    $region29: #{block_forward.1} parent=5 // pred_check
      _
    $region30: #{block_forward.1} parent=5 // pred_check_branch
      %166 = sbr.rel (%p163) target = $region32
    $region31: #{block_forward.1} parent=5 // pred_region
      %s167 = ssub.s32 %s9, 1
      %p168 = scmp.lt.s32.totalorder %s18, 1
      %s169 = scalar_select %p168, %s18, 1
      %s170 = smul.addr %s169, 8
      %s171 = smul.addr %s170, 4
      %s172 = scalar_lea.vmem %s0, %s171
      %p173 = pneg %p47
      %p174 = pneg %p44
      %s175 = smul.u32 2, %s19
      %p176 = scmp.lt.s32.totalorder %s175, 1
      %s177 = scalar_select %p176, %s175, 1
      %s178 = smul.addr %s177, 4
      %s179 = scalar_lea.vmem %s1, %s178
      %p180 = pneg %p73
      %p181 = pneg %p70
      %p182 = pneg %p94
      %p183 = pneg %p91
      %p184 = pneg %p122
      %p185 = pneg %p119
      %s186 = smul.u32 2, %s19
      %p187 = scmp.lt.s32.totalorder %s18, 1
      %s188 = scalar_select %p187, %s18, 1
      %p189 = scmp.lt.s32.totalorder %s186, 1
      %s190 = scalar_select %p189, %s186, 1
      %s191 = smul.addr %s188, 2
      %s192 = sadd.s32 %s190, %s191
      %s193 = smul.addr %s192, 4
      %s194 = scalar_lea.vmem %s3, %s193
      %p195 = scmp.lt.s32.totalorder %s18, 1
      %s196 = scalar_select %p195, %s18, 1
      %s197 = smul.addr %s196, 8
      %s198 = smul.addr %s197, 4
      %s199 = scalar_lea.vmem %s0, %s198
      %s200 = smul.u32 2, %s19
      %p201 = scmp.lt.s32.totalorder %s200, 1
      %s202 = scalar_select %p201, %s200, 1
      %s203 = smul.addr %s202, 4
      %s204 = scalar_lea.vmem %s1, %s203
      %s205 = smul.u32 2, %s19
      %s206 = smul.u32 2, %s19
      %p207 = scmp.lt.s32.totalorder %s18, 1
      %s208 = scalar_select %p207, %s18, 1
      %p209 = scmp.lt.s32.totalorder %s206, 1
      %s210 = scalar_select %p209, %s206, 1
      %s211 = smul.addr %s208, 2
      %s212 = sadd.s32 %s210, %s211
      %s213 = smul.addr %s212, 4
      %s214 = scalar_lea.vmem %s3, %s213
      %s215 = smul.u32 2, %s19
      %v217 = vld [vmem:[%s199] sm:$0xf]
      %v218 = vld [vmem:[%s199 + $0x8] sm:$0xf]
      %v219 = vld [vmem:[%s199 + $0x10] sm:$0xf]
      %v220 = vld [vmem:[%s199 + $0x18] sm:$0xf]
      %v225 = vunpack.c.l.b16 %v217
      %v226 = vunpack.c.l.b16 %v218
      %v227 = vunpack.c.l.b16 %v219
      %v228 = vunpack.c.l.b16 %v220
      %v229 = vpack.c.b16 %v226, %v225
      %v230 = vpack.c.b16 %v228, %v227
      %233 = vst [vmem:[#allocation2] sm:$0xff] %v229
      %234 = vst [vmem:[#allocation2 + $0x8] sm:$0xff] %v230
      %v235 = vld [vmem:[%s199] sm:$0xff]
      %v236 = vld [vmem:[%s199 + $0x8] sm:$0xff]
      %v237 = vld [vmem:[%s199 + $0x10] sm:$0xff]
      %v238 = vld [vmem:[%s199 + $0x18] sm:$0xff]
      %v243 = vunpack.c.l.b16 %v235
      %v244 = vunpack.c.h.b16 %v235
      %v245 = vunpack.c.l.b16 %v236
      %v246 = vunpack.c.h.b16 %v236
      %v247 = vunpack.c.l.b16 %v237
      %v248 = vunpack.c.h.b16 %v237
      %v249 = vunpack.c.l.b16 %v238
      %v250 = vunpack.c.h.b16 %v238
      %v251 = vpack.c.b16 %v245, %v243
      %v252 = vpack.c.b16 %v246, %v244
      %v253 = vpack.c.b16 %v249, %v247
      %v254 = vpack.c.b16 %v250, %v248
      %255 = vrot.lane.b32.xlu0 %v251, 127
      %v256 = vpop.permute.xlu0 %255
      %257 = vrot.lane.b32.xlu0 %v252, 127
      %v258 = vpop.permute.xlu0 %257
      %259 = vrot.lane.b32.xlu0 %v253, 127
      %v260 = vpop.permute.xlu0 %259
      %261 = vrot.lane.b32.xlu0 %v254, 127
      %v262 = vpop.permute.xlu0 %261
      %vm263 = vcmask 1039360
      %v264 = vsel %vm263, %v256, %v258
      %v265 = vsel %vm263, %v260, %v262
      %268 = vst [vmem:[#allocation2 + $0x10] sm:$0xff] %v264
      %269 = vst [vmem:[#allocation2 + $0x18] sm:$0xff] %v265
      %v270 = vld [vmem:[%s199] sm:$0xff]
      %v271 = vld [vmem:[%s199 + $0x8] sm:$0xff]
      %v272 = vld [vmem:[%s199 + $0x10] sm:$0xff]
      %v273 = vld [vmem:[%s199 + $0x18] sm:$0xff]
      %v278 = vunpack.c.l.b16 %v270
      %v279 = vunpack.c.h.b16 %v270
      %v280 = vunpack.c.l.b16 %v271
      %v281 = vunpack.c.h.b16 %v271
      %v282 = vunpack.c.l.b16 %v272
      %v283 = vunpack.c.h.b16 %v272
      %v284 = vunpack.c.l.b16 %v273
      %v285 = vunpack.c.h.b16 %v273
      %v286 = vpack.c.b16 %v280, %v278
      %v287 = vpack.c.b16 %v281, %v279
      %v288 = vpack.c.b16 %v284, %v282
      %v289 = vpack.c.b16 %v285, %v283
      %290 = vrot.lane.b32.xlu0 %v286, 119
      %v291 = vpop.permute.xlu0 %290
      %292 = vrot.lane.b32.xlu0 %v287, 119
      %v293 = vpop.permute.xlu0 %292
      %294 = vrot.lane.b32.xlu0 %v288, 119
      %v295 = vpop.permute.xlu0 %294
      %296 = vrot.lane.b32.xlu0 %v289, 119
      %v297 = vpop.permute.xlu0 %296
      %vm298 = vcmask 973824
      %v299 = vsel %vm298, %v291, %v293
      %v300 = vsel %vm298, %v295, %v297
      %303 = vst [vmem:[#allocation2 + $0x20] sm:$0xff] %v299
      %304 = vst [vmem:[#allocation2 + $0x28] sm:$0xff] %v300
      %v305 = vld [vmem:[%s199] sm:$0xff]
      %v306 = vld [vmem:[%s199 + $0x8] sm:$0xff]
      %v307 = vld [vmem:[%s199 + $0x10] sm:$0xff]
      %v308 = vld [vmem:[%s199 + $0x18] sm:$0xff]
      %v313 = vunpack.c.l.b16 %v305
      %v314 = vunpack.c.h.b16 %v305
      %v315 = vunpack.c.l.b16 %v306
      %v316 = vunpack.c.h.b16 %v306
      %v317 = vunpack.c.l.b16 %v307
      %v318 = vunpack.c.h.b16 %v307
      %v319 = vunpack.c.l.b16 %v308
      %v320 = vunpack.c.h.b16 %v308
      %v321 = vpack.c.b16 %v315, %v313
      %v322 = vpack.c.b16 %v316, %v314
      %v323 = vpack.c.b16 %v319, %v317
      %v324 = vpack.c.b16 %v320, %v318
      %325 = vrot.lane.b32.xlu0 %v321, 118
      %v326 = vpop.permute.xlu0 %325
      %327 = vrot.lane.b32.xlu0 %v322, 118
      %v328 = vpop.permute.xlu0 %327
      %329 = vrot.lane.b32.xlu0 %v323, 118
      %v330 = vpop.permute.xlu0 %329
      %331 = vrot.lane.b32.xlu0 %v324, 118
      %v332 = vpop.permute.xlu0 %331
      %vm333 = vcmask 965632
      %v334 = vsel %vm333, %v326, %v328
      %v335 = vsel %vm333, %v330, %v332
      %338 = vst [vmem:[#allocation2 + $0x30] sm:$0xff] %v334
      %339 = vst [vmem:[#allocation2 + $0x38] sm:$0xff] %v335
      %v340 = vld [vmem:[%s204] sm:$0xf]
      %v341 = vld [vmem:[%s204 + $0x4] sm:$0xf]
      %v342 = vld [vmem:[#allocation2] sm:$0xff]
      %v343 = vld [vmem:[#allocation2 + $0x8] sm:$0xff]
      %v344 = vld [vmem:[#allocation2 + $0x10] sm:$0xff]
      %v345 = vld [vmem:[#allocation2 + $0x18] sm:$0xff]
      %v346 = vld [vmem:[#allocation2 + $0x20] sm:$0xff]
      %v347 = vld [vmem:[#allocation2 + $0x28] sm:$0xff]
      %v348 = vld [vmem:[#allocation2 + $0x30] sm:$0xff]
      %v349 = vld [vmem:[#allocation2 + $0x38] sm:$0xff]
      %v352 = vunpack.c.l.b16 %v340
      %v353 = vunpack.c.l.b16 %v341
      %v354 = vpack.c.b16 %v353, %v352
      %356 = vmatprep.subr.bf16.mxu0 0
      %357 = vmatpush1.bf16.msra.mxu0 %v342
      %358 = vmatprep.subr.bf16.mxu0 0
      %359 = vmatpush1.bf16.msra.mxu0 %v343
      %360 = vmatprep.subr.bf16.mxu0 0
      %361 = vmatpush1.bf16.msra.mxu0 %v344
      %362 = vmatprep.subr.bf16.mxu0 0
      %363 = vmatpush1.bf16.msra.mxu0 %v345
      %364 = vmatprep.subr.bf16.mxu0 0
      %365 = vmatpush1.bf16.msra.mxu0 %v346
      %366 = vmatprep.subr.bf16.mxu0 0
      %367 = vmatpush1.bf16.msra.mxu0 %v347
      %368 = vmatprep.subr.bf16.mxu0 0
      %369 = vmatpush1.bf16.msra.mxu0 %v348
      %370 = vmatprep.subr.bf16.mxu0 0
      %371 = vmatpush1.bf16.msra.mxu0 %v349
      %372 = vmatprep.subr.bf16.mxu0 0
      %373 = vmatpush1.bf16.msra.mxu0 0
      %374 = vmatprep.subr.bf16.mxu0 0
      %375 = vmatpush1.bf16.msra.mxu0 0
      %376 = vmatprep.subr.bf16.mxu0 0
      %377 = vmatpush1.bf16.msra.mxu0 0
      %378 = vmatprep.subr.bf16.mxu0 0
      %379 = vmatpush1.bf16.msra.mxu0 0
      %380 = vmatprep.subr.bf16.mxu0 0
      %381 = vmatpush1.bf16.msra.mxu0 0
      %382 = vmatprep.subr.bf16.mxu0 0
      %383 = vmatpush1.bf16.msra.mxu0 0
      %384 = vmatprep.subr.bf16.mxu0 0
      %385 = vmatpush1.bf16.msra.mxu0 0
      %386 = vmatprep.subr.bf16.mxu0 0
      %387 = vmatpush1.bf16.msra.mxu0 0
      %388 = vmatprep.mubr.bf16.mxu0 0
      %389 = vmatmul.mubr.bf16.gmra.mrb[0].mxu0 %v354
      %v390 = vpop.f32.mrb[0].mxu0
      %v391 = vadd.f32 0.0, %v390
      %v392 = vpop.f32.mrb[0].mxu0
      %v393 = vpop.f32.mrb[0].mxu0
      %v394 = vadd.f32 0.0, %v393
      %v395 = vpop.f32.mrb[0].mxu0
      %396 = vdwg.mxu0
      %v397 = vld [vmem:[%s2] sm:$0x1]
      %v399 = vlaneseq
      %v400 = vshrl.u32 %v399, 7
      %v401 = vsub.s32 0, %v400
      %v402 = vrot.slane %v397, %v401
      %v404 = vmul.f32 %v391, %v402
      %v405 = vmul.f32 %v394, %v402
      %406 = vadd.xlane.f32.xlu0 %v404
      %v407 = vpop.xlane.xlu0 %406
      %408 = vadd.xlane.f32.xlu0 %v405
      %v409 = vpop.xlane.xlu0 %408
      %v410 = vmul.f32 %v407, 0.015625
      %v411 = vmul.f32 %v409, 0.015625
      %v412 = vmul.f32 %v404, %v404
      %v413 = vmul.f32 %v405, %v405
      %414 = vadd.xlane.f32.xlu0 %v412
      %v415 = vpop.xlane.xlu0 %414
      %416 = vadd.xlane.f32.xlu0 %v413
      %v417 = vpop.xlane.xlu0 %416
      %v418 = vmul.f32 %v415, 0.015625
      %v419 = vmul.f32 %v417, 0.015625
      %v420 = vmul.f32 %v410, %v410
      %v421 = vmul.f32 %v411, %v411
      %v422 = vsub.f32 %v418, %v420
      %v423 = vsub.f32 %v419, %v421
      %v424 = vsub.f32 %v391, %v410
      %v425 = vsub.f32 %v394, %v411
      %v426 = vadd.f32 %v422, 1e-05
      %v427 = vadd.f32 %v423, 1e-05
      %v428 = vrsqrt.pop %v426
      %v429 = vrsqrt.pop %v427
      %v430 = vmul.f32 %v424, %v428
      %v431 = vmul.f32 %v425, %v429
      %vm432 = vcmp.gt.f32.partialorder %v430, 0.0
      %vm433 = vcmp.gt.f32.partialorder %v431, 0.0
      %v434 = vmul.f32 %v430, 0.2
      %v435 = vmul.f32 %v431, 0.2
      %v436 = vsel %vm432, %v430, %v434
      %v437 = vsel %vm433, %v431, %v435
      %v438 = vpack.c.bf16 %v437, %v436
      %v440 = vunpack.c.l.b16 %v438
      %v441 = vunpack.c.h.b16 %v438
      %v442 = vpack.c.b16 %v440, %v440
      %v443 = vpack.c.b16 %v441, %v441
      %446 = vst [vmem:[%s214] sm:$0xf] %v442
      %447 = vst [vmem:[%s214 + $0x4] sm:$0xf] %v443
      %s448 = smul.u32 2, %s19
      %p449 = scmp.lt.s32.totalorder %s18, 1
      %s450 = scalar_select %p449, %s18, 1
      %p451 = scmp.lt.s32.totalorder %s448, 1
      %s452 = scalar_select %p451, %s448, 1
      %s453 = smul.addr %s450, 2
      %s454 = sadd.s32 %s452, %s453
      %s455 = smul.addr %s454, 4
      %s456 = scalar_lea.vmem %s3, %s455
      // Predicated region
      $region33: #{block_forward.1} parent=31 // pred_check
        %p457 = pneg %p119
      $region34: #{block_forward.1} parent=31 // pred_check_branch
        %459 = sbr.rel (%p457) target = $region36
      $region35: #{block_forward.1} parent=31 // pred_region
        %s460 = smul.u32 2, %s19
      $region36: #{block_forward.1} parent=31 // pred_fallthru
        _
    $region32: #{block_forward.1} parent=5 // pred_fallthru
      _
    %p461 = scmp.le.s32.totalorder 2, %s9
    // Predicated region
    $region37: #{block_forward.1} parent=5 // pred_check
      %p462 = pneg %p461
    $region38: #{block_forward.1} parent=5 // pred_check_branch
      %464 = sbr.rel (%p462) target = $region40
    $region39: #{block_forward.1} parent=5 // pred_region
      %s465 = ssub.s32 %s9, 2
      // Predicated region
      $region41: #{block_forward.1} parent=39 // pred_check
        %p466 = pneg %p125
      $region42: #{block_forward.1} parent=39 // pred_check_branch
        %468 = sbr.rel (%p466) target = $region44
      $region43: #{block_forward.1} parent=39 // pred_region
        %s469 = smul.u32 2, %s21
        %p470 = scmp.lt.s32.totalorder %s20, 1
        %s471 = scalar_select %p470, %s20, 1
        %p472 = scmp.lt.s32.totalorder %s469, 1
        %s473 = scalar_select %p472, %s469, 1
        %s474 = smul.addr %s471, 2
        %s475 = sadd.s32 %s473, %s474
        %s476 = smul.addr %s475, 4
        %s477 = scalar_lea.vmem %s3, %s476
      $region44: #{block_forward.1} parent=39 // pred_fallthru
        _
    $region40: #{block_forward.1} parent=5 // pred_fallthru
      _
  $region6: #{block_forward.1} parent=0 // loop_footer
    %s13 = sadd.s32 1, %s9
  $region7: #{block_forward.1} parent=0 // loop_footer_branch
    %8 = sbr.rel target = $region3
  $region8: #{block_forward.1} parent=0 // loop_exit
    _

</llo_original>
